<compile_context>
chip_gen: v7x
topology: tpu7x:2x2x1
jax: 0.10.0
libtpu: 0.0.40
codegen_flags: <defaults>
</compile_context>

<pallas_src>
import jax
import jax.numpy as jnp
from jax.experimental import pallas as pl
from jax.experimental.pallas import tpu as pltpu


# ------------------------- Pallas kernel ------------------------------------

def _gtcnn_block_kernel(adj_ref, x_ref, xin_ref, h_ref,
                        w0a_ref, w0b_ref, b0_ref, w1_ref, b1_ref,
                        o_ref, z_ref, acc_ref):
    """Fused GTCNN_block: K-tap graph filter + tanh + MiniMLP, gridded over k."""
    k = pl.program_id(0)

    @pl.when(k == 0)
    def _():
        # Adj^0 @ x == x ; zero the tap accumulator.
        z_ref[...] = x_ref[...]
        acc_ref[...] = jnp.zeros_like(acc_ref)

    @pl.when(k > 0)
    def _():
        # z_k = Adj @ z_{k-1}  (== Adj^k @ x; replaces torch.matrix_power in-loop)
        z_ref[...] = jnp.dot(adj_ref[...], z_ref[...],
                             preferred_element_type=jnp.float32)

    # Sum += (Adj^k @ x) @ H[k]
    acc_ref[...] += jnp.dot(z_ref[...], h_ref[0],
                            preferred_element_type=jnp.float32)

    @pl.when(k == pl.num_programs(0) - 1)
    def _():
        xt = jnp.tanh(acc_ref[...])
        # concat([xt, x_in], -1) @ W0^T  ==  xt @ W0a + x_in @ W0b  (concat folded away)
        h = (jnp.dot(xt, w0a_ref[...], preferred_element_type=jnp.float32)
             + jnp.dot(xin_ref[...], w0b_ref[...], preferred_element_type=jnp.float32)
             + b0_ref[...])
        h = jnp.maximum(h, 0.0)
        o_ref[...] = (jnp.dot(h, w1_ref[...], preferred_element_type=jnp.float32)
                      + b1_ref[...])


# ------------------------- Wrapper -------------------------------------------

def gtcnn_block_forward(prepped, x, x_in):
    """x: [N, C_width], x_in: [N, C_in]; prepped: output of prep_params()."""
    N, C = x.shape
    C_in = x_in.shape[1]
    K = prepped["H"].shape[0]

    const2 = lambda k: (0, 0)
    in_specs = [
        pl.BlockSpec((N, N), const2),                    # Adj      (VMEM-resident)
        pl.BlockSpec((N, C), const2),                    # x
        pl.BlockSpec((N, C_in), const2),                 # x_in
        pl.BlockSpec((1, C, C), lambda k: (k, 0, 0)),    # H[k]     (streams over k)
        pl.BlockSpec((C, C), const2),                    # W0a
        pl.BlockSpec((C_in, C), const2),                 # W0b
        pl.BlockSpec((1, C), const2),                    # b0
        pl.BlockSpec((C, C), const2),                    # W1
        pl.BlockSpec((1, C), const2),                    # b1
    ]

    operands = (prepped["Adj"], x, x_in, prepped["H"], prepped["w0a"],
                prepped["w0b"], prepped["b0"], prepped["w1"], prepped["b1"])

    flops = 2 * N * C * ((K - 1) * N + K * C + (C + C_in) + C)
    bytes_accessed = sum(int(a.size) * 4 for a in operands) + N * C * 4

    return pl.pallas_call(
        _gtcnn_block_kernel,
        out_shape=jax.ShapeDtypeStruct((N, C), jnp.float32),
        grid_spec=pltpu.PrefetchScalarGridSpec(
            num_scalar_prefetch=0,
            grid=(K,),
            in_specs=in_specs,
            out_specs=pl.BlockSpec((N, C), const2),
            scratch_shapes=[pltpu.VMEM((N, C), jnp.float32),   # z   (Adj^k @ x)
                            pltpu.VMEM((N, C), jnp.float32)],  # Sum accumulator
        ),
        compiler_params=pltpu.CompilerParams(
            dimension_semantics=("arbitrary",)),               # k is a recurrence
        cost_estimate=pl.CostEstimate(flops=flops,
                                      transcendentals=N * C,
                                      bytes_accessed=bytes_accessed),
    )(*operands)


# ------------------------- One-time host-side prep ---------------------------

def build_adj(params, T, S):
    s = params["s"]
    I_t = jnp.eye(T, dtype=jnp.float32)
    I_s = jnp.eye(S, dtype=jnp.float32)
    I_st = jnp.eye(T * S, dtype=jnp.float32)
    return (s[0] * I_st
            + s[1] * jnp.kron(I_t, params["Adj_s"])
            + s[2] * jnp.kron(params["Adj_t"], I_s)
            + s[3] * jnp.kron(params["Adj_t"], params["Adj_s"]))


def prep_params(params, T, S):
    """Param-only work hoisted out of the kernel: Adj construction, weight
    transposes, concat split. Done once at parameter-load time."""
    C = params["H"].shape[1]
    w0 = params["w0"]                       # torch layout [C_width, MLP_C]
    return dict(
        Adj=build_adj(params, T, S),        # [N, N]
        H=params["H"],                      # [K, C, C] (right-multiplies; no transpose)
        w0a=jnp.asarray(w0[:, :C].T),       # [C, C]    (xt part of the concat)
        w0b=jnp.asarray(w0[:, C:].T),       # [C_in, C] (x_in part of the concat)
        b0=params["b0"].reshape(1, C),
        w1=jnp.asarray(params["w1"].T),     # [C, C]
        b1=params["b1"].reshape(1, C),
    )


# ------------------------- Pure-JAX reference ---------------------------------

def gtcnn_reference(params, x, x_in, T, S):
    """Mirrors the PyTorch GTCNN_block.forward (with_MLP=True)."""
    Adj = build_adj(params, T, S)
    K = params["H"].shape[0]
    Sum = jnp.zeros_like(x)
    z = x                                    # matrix_power(Adj, 0) @ x
    for k in range(K):
        Sum = Sum + z @ params["H"][k]
        z = Adj @ z                          # == matrix_power(Adj, k+1) @ x
    xt = jnp.tanh(Sum)
    feat = jnp.concatenate([xt, x_in], axis=-1)
    h = jnp.maximum(feat @ params["w0"].T + params["b0"], 0.0)
    return h @ params["w1"].T + params["b1"]


# ------------------------- Deterministic parameter init ----------------------

def init_params(key, K, C_in, C_width, T, S):
    ks = jax.random.split(key, 8)
    # nn.init.normal_ analogues, scaled so activations stay O(1) (avoids tanh
    # saturation hiding numerical differences).
    H = 0.1 * jax.random.normal(ks[0], (K, C_width, C_width), jnp.float32)
    s = 0.4 * jax.random.normal(ks[1], (4,), jnp.float32)
    Adj_t = jax.random.normal(ks[2], (T, T), jnp.float32) / T
    Adj_s = jax.random.normal(ks[3], (S, S), jnp.float32) / S
    MLP_C = C_in + C_width
    w0 = 0.1 * jax.random.normal(ks[4], (C_width, MLP_C), jnp.float32)
    b0 = 0.1 * jax.random.normal(ks[5], (C_width,), jnp.float32)
    w1 = 0.1 * jax.random.normal(ks[6], (C_width, C_width), jnp.float32)
    b1 = 0.1 * jax.random.normal(ks[7], (C_width,), jnp.float32)
    return dict(H=H, s=s, Adj_t=Adj_t, Adj_s=Adj_s, w0=w0, b0=b0, w1=w1, b1=b1)


# ------------------------- Main ----------------------------------------------

if __name__ == "__main__":
    T, S = 4, 16            # temporal / spatial graph sizes -> N = T*S product-graph nodes
    N = T * S               # 64
    K = 3                   # filter order (number of taps)
    C_in = 8
    C_width = 32

    key = jax.random.PRNGKey(0)
    kx, kxin, kp = jax.random.split(key, 3)
    x = jax.random.normal(kx, (N, C_width), jnp.float32)
    x_in = jax.random.normal(kxin, (N, C_in), jnp.float32)

    params = init_params(kp, K, C_in, C_width, T, S)
    prepped = prep_params(params, T, S)

    out = gtcnn_block_forward(prepped, x, x_in)
    out = jax.block_until_ready(out)

    ref = gtcnn_reference(params, x, x_in, T, S)
    assert out.shape == (N, C_width)
    # MXU f32 matmuls use reduced-precision passes by default; 1e-3 gives headroom
    # while any semantic error (wrong split/transpose/missing tap) would be O(0.1+).
    assert jnp.allclose(out, ref, rtol=1e-3, atol=1e-3), "mismatch vs reference"

    print("KERNEL_OK")
</pallas_src>

<mosaic_0001>
module attributes {stable_mosaic.version = 11 : i64} {
  func.func @_gtcnn_block_kernel(%arg0: i32, %arg1: memref<64x64xf32, #tpu.memory_space<vmem>>, %arg2: memref<64x32xf32, #tpu.memory_space<vmem>>, %arg3: memref<64x8xf32, #tpu.memory_space<vmem>>, %arg4: memref<1x32x32xf32, #tpu.memory_space<vmem>>, %arg5: memref<32x32xf32, #tpu.memory_space<vmem>>, %arg6: memref<8x32xf32, #tpu.memory_space<vmem>>, %arg7: memref<1x32xf32, #tpu.memory_space<vmem>>, %arg8: memref<32x32xf32, #tpu.memory_space<vmem>>, %arg9: memref<1x32xf32, #tpu.memory_space<vmem>>, %arg10: memref<64x32xf32, #tpu.memory_space<vmem>>, %arg11: memref<64x32xf32, #tpu.memory_space<vmem>>, %arg12: memref<64x32xf32, #tpu.memory_space<vmem>>) attributes {dimension_semantics = [#tpu.dimension_semantics<arbitrary>], iteration_bounds = array<i64: 3>, scalar_prefetch = 0 : i64, scratch_operands = 2 : i64, tpu.core_type = #tpu.core_type<tc>, window_params = [{pipeline_mode = #tpu.pipeline_mode<synchronous>, transform_indices = @transform_0, window_bounds = array<i64: 64, 64>}, {pipeline_mode = #tpu.pipeline_mode<synchronous>, transform_indices = @transform_1, window_bounds = array<i64: 64, 32>}, {pipeline_mode = #tpu.pipeline_mode<synchronous>, transform_indices = @transform_2, window_bounds = array<i64: 64, 8>}, {transform_indices = @transform_3, window_bounds = array<i64: 1, 32, 32>}, {pipeline_mode = #tpu.pipeline_mode<synchronous>, transform_indices = @transform_4, window_bounds = array<i64: 32, 32>}, {pipeline_mode = #tpu.pipeline_mode<synchronous>, transform_indices = @transform_5, window_bounds = array<i64: 8, 32>}, {pipeline_mode = #tpu.pipeline_mode<synchronous>, transform_indices = @transform_6, window_bounds = array<i64: 1, 32>}, {pipeline_mode = #tpu.pipeline_mode<synchronous>, transform_indices = @transform_7, window_bounds = array<i64: 32, 32>}, {pipeline_mode = #tpu.pipeline_mode<synchronous>, transform_indices = @transform_8, window_bounds = array<i64: 1, 32>}, {pipeline_mode = #tpu.pipeline_mode<synchronous>, transform_indices = @transform_9, window_bounds = array<i64: 64, 32>}]} {
    %c0_i32 = arith.constant 0 : i32
    %0 = arith.cmpi eq, %arg0, %c0_i32 : i32
    %1 = arith.extui %0 : i1 to i32
    %c0_i32_0 = arith.constant 0 : i32
    %2 = arith.cmpi ne, %1, %c0_i32_0 : i32
    scf.if %2 {
      %c0_12 = arith.constant 0 : index
      %c0_13 = arith.constant 0 : index
      %16 = vector.load %arg2[%c0_12, %c0_13] : memref<64x32xf32, #tpu.memory_space<vmem>>, vector<64x32xf32>
      %c0_14 = arith.constant 0 : index
      %c0_15 = arith.constant 0 : index
      %17 = vector.load %arg11[%c0_14, %c0_15] : memref<64x32xf32, #tpu.memory_space<vmem>>, vector<64x32xf32>
      tpu.vector_store %arg11[%c0_14, %c0_15], %16 {strides = array<i32>} : memref<64x32xf32, #tpu.memory_space<vmem>>, vector<64x32xf32>,
      %cst_16 = arith.constant 0.000000e+00 : f32
      %18 = vector.broadcast %cst_16 : f32 to vector<64x32xf32>
      %c0_17 = arith.constant 0 : index
      %c0_18 = arith.constant 0 : index
      %19 = vector.load %arg12[%c0_17, %c0_18] : memref<64x32xf32, #tpu.memory_space<vmem>>, vector<64x32xf32>
      tpu.vector_store %arg12[%c0_17, %c0_18], %18 {strides = array<i32>} : memref<64x32xf32, #tpu.memory_space<vmem>>, vector<64x32xf32>,
    } else {
    }
    %c0_i32_1 = arith.constant 0 : i32
    %3 = arith.cmpi sgt, %arg0, %c0_i32_1 : i32
    %4 = arith.extui %3 : i1 to i32
    %c0_i32_2 = arith.constant 0 : i32
    %5 = arith.cmpi ne, %4, %c0_i32_2 : i32
    scf.if %5 {
      %c0_12 = arith.constant 0 : index
      %c0_13 = arith.constant 0 : index
      %16 = vector.load %arg1[%c0_12, %c0_13] : memref<64x64xf32, #tpu.memory_space<vmem>>, vector<64x64xf32>
      %c0_14 = arith.constant 0 : index
      %c0_15 = arith.constant 0 : index
      %17 = vector.load %arg11[%c0_14, %c0_15] : memref<64x32xf32, #tpu.memory_space<vmem>>, vector<64x32xf32>
      %cst_16 = arith.constant dense<0.000000e+00> : vector<64x32xf32>
      %18 = tpu.matmul %16, %17, %cst_16 {dimension_numbers = #tpu.dot_dimension_numbers<[1], [0], [0], [1], [0, 0, 1, 1], [], []>} : vector<64x64xf32>, vector<64x32xf32>, vector<64x32xf32> -> vector<64x32xf32>
      %c0_17 = arith.constant 0 : index
      %c0_18 = arith.constant 0 : index
      %19 = vector.load %arg11[%c0_17, %c0_18] : memref<64x32xf32, #tpu.memory_space<vmem>>, vector<64x32xf32>
      tpu.vector_store %arg11[%c0_17, %c0_18], %18 {strides = array<i32>} : memref<64x32xf32, #tpu.memory_space<vmem>>, vector<64x32xf32>,
    } else {
    }
    %c0 = arith.constant 0 : index
    %c0_3 = arith.constant 0 : index
    %6 = vector.load %arg12[%c0, %c0_3] : memref<64x32xf32, #tpu.memory_space<vmem>>, vector<64x32xf32>
    %c0_4 = arith.constant 0 : index
    %c0_5 = arith.constant 0 : index
    %7 = vector.load %arg11[%c0_4, %c0_5] : memref<64x32xf32, #tpu.memory_space<vmem>>, vector<64x32xf32>
    %c0_6 = arith.constant 0 : index
    %c0_7 = arith.constant 0 : index
    %c0_8 = arith.constant 0 : index
    %8 = vector.load %arg4[%c0_6, %c0_7, %c0_8] : memref<1x32x32xf32, #tpu.memory_space<vmem>>, vector<1x32x32xf32>
    %9 = vector.shape_cast %8 : vector<1x32x32xf32> to vector<32x32xf32>
    %cst = arith.constant dense<0.000000e+00> : vector<64x32xf32>
    %10 = tpu.matmul %7, %9, %cst {dimension_numbers = #tpu.dot_dimension_numbers<[1], [0], [0], [1], [0, 0, 1, 1], [], []>} : vector<64x32xf32>, vector<32x32xf32>, vector<64x32xf32> -> vector<64x32xf32>
    %11 = arith.addf %6, %10 : vector<64x32xf32>
    %c0_9 = arith.constant 0 : index
    %c0_10 = arith.constant 0 : index
    %12 = vector.load %arg12[%c0_9, %c0_10] : memref<64x32xf32, #tpu.memory_space<vmem>>, vector<64x32xf32>
    tpu.vector_store %arg12[%c0_9, %c0_10], %11 {strides = array<i32>} : memref<64x32xf32, #tpu.memory_space<vmem>>, vector<64x32xf32>,
    %c2_i32 = arith.constant 2 : i32
    %13 = arith.cmpi eq, %arg0, %c2_i32 : i32
    %14 = arith.extui %13 : i1 to i32
    %c0_i32_11 = arith.constant 0 : i32
    %15 = arith.cmpi ne, %14, %c0_i32_11 : i32
    scf.if %15 {
      %c0_12 = arith.constant 0 : index
      %c0_13 = arith.constant 0 : index
      %16 = vector.load %arg12[%c0_12, %c0_13] : memref<64x32xf32, #tpu.memory_space<vmem>>, vector<64x32xf32>
      %17 = math.tanh %16 : vector<64x32xf32>
      %c0_14 = arith.constant 0 : index
      %c0_15 = arith.constant 0 : index
      %18 = vector.load %arg5[%c0_14, %c0_15] : memref<32x32xf32, #tpu.memory_space<vmem>>, vector<32x32xf32>
      %cst_16 = arith.constant dense<0.000000e+00> : vector<64x32xf32>
      %19 = tpu.matmul %17, %18, %cst_16 {dimension_numbers = #tpu.dot_dimension_numbers<[1], [0], [0], [1], [0, 0, 1, 1], [], []>} : vector<64x32xf32>, vector<32x32xf32>, vector<64x32xf32> -> vector<64x32xf32>
      %c0_17 = arith.constant 0 : index
      %c0_18 = arith.constant 0 : index
      %20 = vector.load %arg3[%c0_17, %c0_18] : memref<64x8xf32, #tpu.memory_space<vmem>>, vector<64x8xf32>
      %c0_19 = arith.constant 0 : index
      %c0_20 = arith.constant 0 : index
      %21 = vector.load %arg6[%c0_19, %c0_20] : memref<8x32xf32, #tpu.memory_space<vmem>>, vector<8x32xf32>
      %cst_21 = arith.constant dense<0.000000e+00> : vector<64x32xf32>
      %22 = tpu.matmul %20, %21, %cst_21 {dimension_numbers = #tpu.dot_dimension_numbers<[1], [0], [0], [1], [0, 0, 1, 1], [], []>} : vector<64x8xf32>, vector<8x32xf32>, vector<64x32xf32> -> vector<64x32xf32>
      %23 = arith.addf %19, %22 : vector<64x32xf32>
      %c0_22 = arith.constant 0 : index
      %c0_23 = arith.constant 0 : index
      %24 = vector.load %arg7[%c0_22, %c0_23] : memref<1x32xf32, #tpu.memory_space<vmem>>, vector<1x32xf32>
      %25 = vector.broadcast %24 : vector<1x32xf32> to vector<64x32xf32>
      %26 = arith.addf %23, %25 : vector<64x32xf32>
      %cst_24 = arith.constant 0.000000e+00 : f32
      %27 = vector.broadcast %cst_24 : f32 to vector<64x32xf32>
      %28 = arith.maximumf %26, %27 : vector<64x32xf32>
      %c0_25 = arith.constant 0 : index
      %c0_26 = arith.constant 0 : index
      %29 = vector.load %arg8[%c0_25, %c0_26] : memref<32x32xf32, #tpu.memory_space<vmem>>, vector<32x32xf32>
      %cst_27 = arith.constant dense<0.000000e+00> : vector<64x32xf32>
      %30 = tpu.matmul %28, %29, %cst_27 {dimension_numbers = #tpu.dot_dimension_numbers<[1], [0], [0], [1], [0, 0, 1, 1], [], []>} : vector<64x32xf32>, vector<32x32xf32>, vector<64x32xf32> -> vector<64x32xf32>
      %c0_28 = arith.constant 0 : index
      %c0_29 = arith.constant 0 : index
      %31 = vector.load %arg9[%c0_28, %c0_29] : memref<1x32xf32, #tpu.memory_space<vmem>>, vector<1x32xf32>
      %32 = vector.broadcast %31 : vector<1x32xf32> to vector<64x32xf32>
      %33 = arith.addf %30, %32 : vector<64x32xf32>
      %c0_30 = arith.constant 0 : index
      %c0_31 = arith.constant 0 : index
      %34 = vector.load %arg10[%c0_30, %c0_31] : memref<64x32xf32, #tpu.memory_space<vmem>>, vector<64x32xf32>
      tpu.vector_store %arg10[%c0_30, %c0_31], %33 {strides = array<i32>} : memref<64x32xf32, #tpu.memory_space<vmem>>, vector<64x32xf32>,
    } else {
    }
    return
  }
  func.func @transform_0(%arg0: i32) -> (i32, i32) {
    %c0_i32 = arith.constant 0 : i32
    %c0_i32_0 = arith.constant 0 : i32
    %c0_i32_1 = arith.constant 0 : i32
    return %c0_i32, %c0_i32_0 : i32, i32
  }
  func.func @transform_1(%arg0: i32) -> (i32, i32) {
    %c0_i32 = arith.constant 0 : i32
    %c0_i32_0 = arith.constant 0 : i32
    %c0_i32_1 = arith.constant 0 : i32
    return %c0_i32, %c0_i32_0 : i32, i32
  }
  func.func @transform_2(%arg0: i32) -> (i32, i32) {
    %c0_i32 = arith.constant 0 : i32
    %c0_i32_0 = arith.constant 0 : i32
    %c0_i32_1 = arith.constant 0 : i32
    return %c0_i32, %c0_i32_0 : i32, i32
  }
  func.func @transform_3(%arg0: i32) -> (i32, i32, i32) {
    %c0_i32 = arith.constant 0 : i32
    %c0_i32_0 = arith.constant 0 : i32
    %c0_i32_1 = arith.constant 0 : i32
    return %arg0, %c0_i32, %c0_i32_0 : i32, i32, i32
  }
  func.func @transform_4(%arg0: i32) -> (i32, i32) {
    %c0_i32 = arith.constant 0 : i32
    %c0_i32_0 = arith.constant 0 : i32
    %c0_i32_1 = arith.constant 0 : i32
    return %c0_i32, %c0_i32_0 : i32, i32
  }
  func.func @transform_5(%arg0: i32) -> (i32, i32) {
    %c0_i32 = arith.constant 0 : i32
    %c0_i32_0 = arith.constant 0 : i32
    %c0_i32_1 = arith.constant 0 : i32
    return %c0_i32, %c0_i32_0 : i32, i32
  }
  func.func @transform_6(%arg0: i32) -> (i32, i32) {
    %c0_i32 = arith.constant 0 : i32
    %c0_i32_0 = arith.constant 0 : i32
    %c0_i32_1 = arith.constant 0 : i32
    return %c0_i32, %c0_i32_0 : i32, i32
  }
  func.func @transform_7(%arg0: i32) -> (i32, i32) {
    %c0_i32 = arith.constant 0 : i32
    %c0_i32_0 = arith.constant 0 : i32
    %c0_i32_1 = arith.constant 0 : i32
    return %c0_i32, %c0_i32_0 : i32, i32
  }
  func.func @transform_8(%arg0: i32) -> (i32, i32) {
    %c0_i32 = arith.constant 0 : i32
    %c0_i32_0 = arith.constant 0 : i32
    %c0_i32_1 = arith.constant 0 : i32
    return %c0_i32, %c0_i32_0 : i32, i32
  }
  func.func @transform_9(%arg0: i32) -> (i32, i32) {
    %c0_i32 = arith.constant 0 : i32
    %c0_i32_0 = arith.constant 0 : i32
    %c0_i32_1 = arith.constant 0 : i32
    return %c0_i32, %c0_i32_0 : i32, i32
  }
}

</mosaic_0001>

<llo_original>
// kernel: tpu_custom_call.1
$region0: #{tpu_custom_call.1}
  #allocation0 [shape = 'u32[]', space=smem, size = 0x4, offset = 0x4, fixed_abs, tag = 'smem constant byte address 0x4 - core index']
  #allocation1 [shape = 'u32[144,128]{1,0:T(1,128)}', space=vmem, size = 0x12000, scoped, tag = 'internal scratch']
  #allocation2 [shape = 'f32[64,32]{1,0:T(8,128)}', space=vmem, size = 0x8000, scoped, tag = 'scratch operand']
  #allocation3 [shape = 'f32[64,32]{1,0:T(8,128)}', space=vmem, size = 0x8000, scoped, tag = 'scratch operand']
  %s0 = inlined_call_operand.vmem [shape: f32[64,64], index: 0, kind: input, shape index: {}]
  %s1 = inlined_call_operand.vmem [shape: f32[64,32], index: 1, kind: input, shape index: {}]
  %s2 = inlined_call_operand.vmem [shape: f32[64,8], index: 2, kind: input, shape index: {}]
  %s3 = inlined_call_operand.vmem [shape: f32[3,32,32], index: 3, kind: input, shape index: {}]
  %s4 = inlined_call_operand.hbm [shape: f32[32,32], index: 4, kind: input, shape index: {}]
  %s5 = inlined_call_operand.hbm [shape: f32[8,32], index: 5, kind: input, shape index: {}]
  %s6 = inlined_call_operand.vmem [shape: f32[1,32], index: 6, kind: input, shape index: {}]
  %s7 = inlined_call_operand.vmem [shape: f32[32,32], index: 7, kind: input, shape index: {}]
  %s8 = inlined_call_operand.vmem [shape: f32[1,32], index: 8, kind: input, shape index: {}]
  %s9 = inlined_call_operand.vmem [shape: f32[64,32], index: 9, kind: output, shape index: {}]
  %s10 = sld [smem:[#allocation0]]
  $region89: #{tpu_custom_call.1} parent=0
    _
  %s12 = ssub.s32 1, %s10
  %s13 = scalar_select 0, %s12, %s10
  $region1: #{tpu_custom_call.1} parent=0
    #allocation4 [shape = 'u8[16384]{0}', space=vmem, size = 0x4000, scoped, tag = 'input window, operand 4, single buffered']
    #allocation5 [shape = 's32[2]{0}', space=sflag, size = 0x8, scoped, tag = 'scoped memory for tpu_custom_call.1']
    #allocation6 [shape = 'u8[4096]{0}', space=vmem, size = 0x1000, scoped, tag = 'input window, operand 5, single buffered']
    #allocation7 [shape = 's32[1]{0}', space=sflag, size = 0x4, scoped, tag = 'scoped memory for tpu_custom_call.1']
    %14 = vsyncpa [#allocation5], 0
    %15 = vsyncpa [#allocation7], 0
    loop: start=0, step=1, limit=5
    $region2: #{tpu_custom_call.1} parent=1 // loop_pre_header
      _
    $region3: #{tpu_custom_call.1} parent=1 // loop_header
      %s17 = sphi 0, %s21
      %p18 = scmp.ge.s32.totalorder %s17, 5
      %s25 = sphi 0, %s25
      %s27 = sphi 0, %s25
      %s28 = sphi 0, %s27
      %s42 = sphi 0, %s28
      %s46 = sphi 0, %s46
      %s48 = sphi 0, %s46
      %s49 = sphi 0, %s48
      %s63 = sphi 0, %s49
      %s67 = sphi 0, %s67
      %s69 = sphi 0, %s67
      %s70 = sphi 0, %s69
      %s84 = sphi 0, %s70
      %s90 = sphi 0, %s92
      %s93 = sphi 0, %s90
      %s94 = sphi 0, %s93
      %s110 = sphi 0, %s94
      %s114 = sphi 0, %s114
      %s116 = sphi 0, %s114
      %s117 = sphi 0, %s116
      %s131 = sphi 0, %s117
      %s135 = sphi 0, %s135
      %s137 = sphi 0, %s135
      %s138 = sphi 0, %s137
      %s152 = sphi 0, %s138
      %s156 = sphi 0, %s156
      %s158 = sphi 0, %s156
      %s159 = sphi 0, %s158
      %s173 = sphi 0, %s159
      %s177 = sphi 0, %s177
      %s179 = sphi 0, %s177
      %s180 = sphi 0, %s179
      %s194 = sphi 0, %s180
      %s198 = sphi 0, %s198
      %s200 = sphi 0, %s198
      %s201 = sphi 0, %s200
      %s215 = sphi 0, %s201
      %s219 = sphi 0, %s219
      %s221 = sphi 0, %s219
      %s222 = sphi 0, %s221
      %s236 = sphi 0, %s222
    $region4: #{tpu_custom_call.1} parent=1 // loop_header_branch
      %20 = sbr.rel (%p18) target = $region8
    $region5: #{tpu_custom_call.1} parent=1 // loop_body
      %s22 = ssub.s32 %s17, 1
      %s23 = ssub.s32 %s17, 2
      %s24 = sadd.s32 %s17, 1
      %s26 = sadd.s32 %s25, 1
      %p29 = scmp.eq.s32.totalorder %s17, 2
      %p30 = scmp.ne.s32.totalorder %s25, %s27
      %p31 = scmp.eq.s32.totalorder %s17, 0
      %p32 = por %p30, %p31
      %p33 = scmp.ne.s32.totalorder %s25, %s27
      %p34 = scmp.eq.s32.totalorder %s22, 2
      %p35 = por %p33, %p34
      %p36 = scmp.ne.s32.totalorder %s27, %s28
      %p37 = scmp.eq.s32.totalorder %s22, 0
      %p38 = por %p36, %p37
      %p39 = scmp.ne.s32.totalorder %s27, %s28
      %p40 = scmp.eq.s32.totalorder %s23, 2
      %p41 = por %p39, %p40
      %p43 = scmp.ne.s32.totalorder %s28, %s42
      %p44 = scmp.eq.s32.totalorder %s23, 0
      %p45 = por %p43, %p44
      %s47 = sadd.s32 %s46, 1
      %p50 = scmp.eq.s32.totalorder %s17, 2
      %p51 = scmp.ne.s32.totalorder %s46, %s48
      %p52 = scmp.eq.s32.totalorder %s17, 0
      %p53 = por %p51, %p52
      %p54 = scmp.ne.s32.totalorder %s46, %s48
      %p55 = scmp.eq.s32.totalorder %s22, 2
      %p56 = por %p54, %p55
      %p57 = scmp.ne.s32.totalorder %s48, %s49
      %p58 = scmp.eq.s32.totalorder %s22, 0
      %p59 = por %p57, %p58
      %p60 = scmp.ne.s32.totalorder %s48, %s49
      %p61 = scmp.eq.s32.totalorder %s23, 2
      %p62 = por %p60, %p61
      %p64 = scmp.ne.s32.totalorder %s49, %s63
      %p65 = scmp.eq.s32.totalorder %s23, 0
      %p66 = por %p64, %p65
      %s68 = sadd.s32 %s67, 1
      %p71 = scmp.eq.s32.totalorder %s17, 2
      %p72 = scmp.ne.s32.totalorder %s67, %s69
      %p73 = scmp.eq.s32.totalorder %s17, 0
      %p74 = por %p72, %p73
      %p75 = scmp.ne.s32.totalorder %s67, %s69
      %p76 = scmp.eq.s32.totalorder %s22, 2
      %p77 = por %p75, %p76
      %p78 = scmp.ne.s32.totalorder %s69, %s70
      %p79 = scmp.eq.s32.totalorder %s22, 0
      %p80 = por %p78, %p79
      %p81 = scmp.ne.s32.totalorder %s69, %s70
      %p82 = scmp.eq.s32.totalorder %s23, 2
      %p83 = por %p81, %p82
      %p85 = scmp.ne.s32.totalorder %s70, %s84
      %p86 = scmp.eq.s32.totalorder %s23, 0
      %p87 = por %p85, %p86
      %s88 = ssub.s32 %s17, %s24
      %p89 = scmp.eq.s32.totalorder %s88, 0
      %s91 = sadd.s32 %s90, 1
      %s92 = scalar_select %p89, %s90, %s91
      %p95 = pneg %p89
      %p96 = scmp.eq.s32.totalorder %s17, 2
      %p97 = por %p95, %p96
      %p98 = scmp.ne.s32.totalorder %s90, %s93
      %p99 = scmp.eq.s32.totalorder %s17, 0
      %p100 = por %p98, %p99
      %p101 = scmp.ne.s32.totalorder %s90, %s93
      %p102 = scmp.eq.s32.totalorder %s22, 2
      %p103 = por %p101, %p102
      %p104 = scmp.ne.s32.totalorder %s93, %s94
      %p105 = scmp.eq.s32.totalorder %s22, 0
      %p106 = por %p104, %p105
      %p107 = scmp.ne.s32.totalorder %s93, %s94
      %p108 = scmp.eq.s32.totalorder %s23, 2
      %p109 = por %p107, %p108
      %p111 = scmp.ne.s32.totalorder %s94, %s110
      %p112 = scmp.eq.s32.totalorder %s23, 0
      %p113 = por %p111, %p112
      %s115 = sadd.s32 %s114, 1
      %p118 = scmp.eq.s32.totalorder %s17, 2
      %p119 = scmp.ne.s32.totalorder %s114, %s116
      %p120 = scmp.eq.s32.totalorder %s17, 0
      %p121 = por %p119, %p120
      %p122 = scmp.ne.s32.totalorder %s114, %s116
      %p123 = scmp.eq.s32.totalorder %s22, 2
      %p124 = por %p122, %p123
      %p125 = scmp.ne.s32.totalorder %s116, %s117
      %p126 = scmp.eq.s32.totalorder %s22, 0
      %p127 = por %p125, %p126
      %p128 = scmp.ne.s32.totalorder %s116, %s117
      %p129 = scmp.eq.s32.totalorder %s23, 2
      %p130 = por %p128, %p129
      %p132 = scmp.ne.s32.totalorder %s117, %s131
      %p133 = scmp.eq.s32.totalorder %s23, 0
      %p134 = por %p132, %p133
      %s136 = sadd.s32 %s135, 1
      %p139 = scmp.eq.s32.totalorder %s17, 2
      %p140 = scmp.ne.s32.totalorder %s135, %s137
      %p141 = scmp.eq.s32.totalorder %s17, 0
      %p142 = por %p140, %p141
      %p143 = scmp.ne.s32.totalorder %s135, %s137
      %p144 = scmp.eq.s32.totalorder %s22, 2
      %p145 = por %p143, %p144
      %p146 = scmp.ne.s32.totalorder %s137, %s138
      %p147 = scmp.eq.s32.totalorder %s22, 0
      %p148 = por %p146, %p147
      %p149 = scmp.ne.s32.totalorder %s137, %s138
      %p150 = scmp.eq.s32.totalorder %s23, 2
      %p151 = por %p149, %p150
      %p153 = scmp.ne.s32.totalorder %s138, %s152
      %p154 = scmp.eq.s32.totalorder %s23, 0
      %p155 = por %p153, %p154
      %s157 = sadd.s32 %s156, 1
      %p160 = scmp.eq.s32.totalorder %s17, 2
      %p161 = scmp.ne.s32.totalorder %s156, %s158
      %p162 = scmp.eq.s32.totalorder %s17, 0
      %p163 = por %p161, %p162
      %p164 = scmp.ne.s32.totalorder %s156, %s158
      %p165 = scmp.eq.s32.totalorder %s22, 2
      %p166 = por %p164, %p165
      %p167 = scmp.ne.s32.totalorder %s158, %s159
      %p168 = scmp.eq.s32.totalorder %s22, 0
      %p169 = por %p167, %p168
      %p170 = scmp.ne.s32.totalorder %s158, %s159
      %p171 = scmp.eq.s32.totalorder %s23, 2
      %p172 = por %p170, %p171
      %p174 = scmp.ne.s32.totalorder %s159, %s173
      %p175 = scmp.eq.s32.totalorder %s23, 0
      %p176 = por %p174, %p175
      %s178 = sadd.s32 %s177, 1
      %p181 = scmp.eq.s32.totalorder %s17, 2
      %p182 = scmp.ne.s32.totalorder %s177, %s179
      %p183 = scmp.eq.s32.totalorder %s17, 0
      %p184 = por %p182, %p183
      %p185 = scmp.ne.s32.totalorder %s177, %s179
      %p186 = scmp.eq.s32.totalorder %s22, 2
      %p187 = por %p185, %p186
      %p188 = scmp.ne.s32.totalorder %s179, %s180
      %p189 = scmp.eq.s32.totalorder %s22, 0
      %p190 = por %p188, %p189
      %p191 = scmp.ne.s32.totalorder %s179, %s180
      %p192 = scmp.eq.s32.totalorder %s23, 2
      %p193 = por %p191, %p192
      %p195 = scmp.ne.s32.totalorder %s180, %s194
      %p196 = scmp.eq.s32.totalorder %s23, 0
      %p197 = por %p195, %p196
      %s199 = sadd.s32 %s198, 1
      %p202 = scmp.eq.s32.totalorder %s17, 2
      %p203 = scmp.ne.s32.totalorder %s198, %s200
      %p204 = scmp.eq.s32.totalorder %s17, 0
      %p205 = por %p203, %p204
      %p206 = scmp.ne.s32.totalorder %s198, %s200
      %p207 = scmp.eq.s32.totalorder %s22, 2
      %p208 = por %p206, %p207
      %p209 = scmp.ne.s32.totalorder %s200, %s201
      %p210 = scmp.eq.s32.totalorder %s22, 0
      %p211 = por %p209, %p210
      %p212 = scmp.ne.s32.totalorder %s200, %s201
      %p213 = scmp.eq.s32.totalorder %s23, 2
      %p214 = por %p212, %p213
      %p216 = scmp.ne.s32.totalorder %s201, %s215
      %p217 = scmp.eq.s32.totalorder %s23, 0
      %p218 = por %p216, %p217
      %s220 = sadd.s32 %s219, 1
      %p223 = scmp.eq.s32.totalorder %s17, 2
      %p224 = scmp.ne.s32.totalorder %s219, %s221
      %p225 = scmp.eq.s32.totalorder %s17, 0
      %p226 = por %p224, %p225
      %p227 = scmp.ne.s32.totalorder %s219, %s221
      %p228 = scmp.eq.s32.totalorder %s22, 2
      %p229 = por %p227, %p228
      %p230 = scmp.ne.s32.totalorder %s221, %s222
      %p231 = scmp.eq.s32.totalorder %s22, 0
      %p232 = por %p230, %p231
      %p233 = scmp.ne.s32.totalorder %s221, %s222
      %p234 = scmp.eq.s32.totalorder %s23, 2
      %p235 = por %p233, %p234
      %p237 = scmp.ne.s32.totalorder %s222, %s236
      %p238 = scmp.eq.s32.totalorder %s23, 0
      %p239 = por %p237, %p238
      %p240 = scmp.le.s32.totalorder 1, %s17
      %p241 = scmp.lt.s32.totalorder %s17, 4
      %p242 = pnand %p240, %p241
      %p243 = pneg %p242
      // Predicated region
      $region9: #{tpu_custom_call.1} parent=5 // pred_check
        _
      $region10: #{tpu_custom_call.1} parent=5 // pred_check_branch
        %245 = sbr.rel (%p242) target = $region12
      $region11: #{tpu_custom_call.1} parent=5 // pred_region
        %s246 = ssub.s32 %s17, 1
        // Predicated region
        $region13: #{tpu_custom_call.1} parent=11 // pred_check
          %p247 = pneg %p38
        $region14: #{tpu_custom_call.1} parent=11 // pred_check_branch
          %249 = sbr.rel (%p247) target = $region16
        $region15: #{tpu_custom_call.1} parent=11 // pred_region
          _
        $region16: #{tpu_custom_call.1} parent=11 // pred_fallthru
          _
        // Predicated region
        $region17: #{tpu_custom_call.1} parent=11 // pred_check
          %p250 = pneg %p59
        $region18: #{tpu_custom_call.1} parent=11 // pred_check_branch
          %252 = sbr.rel (%p250) target = $region20
        $region19: #{tpu_custom_call.1} parent=11 // pred_region
          _
        $region20: #{tpu_custom_call.1} parent=11 // pred_fallthru
          _
        // Predicated region
        $region21: #{tpu_custom_call.1} parent=11 // pred_check
          %p253 = pneg %p80
        $region22: #{tpu_custom_call.1} parent=11 // pred_check_branch
          %255 = sbr.rel (%p253) target = $region24
        $region23: #{tpu_custom_call.1} parent=11 // pred_region
          _
        $region24: #{tpu_custom_call.1} parent=11 // pred_fallthru
          _
        // Predicated region
        $region25: #{tpu_custom_call.1} parent=11 // pred_check
          %p256 = pneg %p127
        $region26: #{tpu_custom_call.1} parent=11 // pred_check_branch
          %258 = sbr.rel (%p256) target = $region28
        $region27: #{tpu_custom_call.1} parent=11 // pred_region
          %s260 = ssub.s32 512, 512
          %261 = vsyncadd [#allocation5], %s260
          %s262 = sshll.u32 [#allocation4], 4
          %s263 = int_to_ptr.vmem [resolvable:$true] %s262
          %268 = dma.hbm_to_vmem [thread:$0]  %s4, 512, %s263, [#allocation5], 128, 128, 8
        $region28: #{tpu_custom_call.1} parent=11 // pred_fallthru
          _
        // Predicated region
        $region29: #{tpu_custom_call.1} parent=11 // pred_check
          %p269 = pneg %p148
        $region30: #{tpu_custom_call.1} parent=11 // pred_check_branch
          %271 = sbr.rel (%p269) target = $region32
        $region31: #{tpu_custom_call.1} parent=11 // pred_region
          %s273 = ssub.s32 128, 128
          %274 = vsyncadd [#allocation7], %s273
          %s276 = sshll.u32 [#allocation6], 4
          %s277 = int_to_ptr.vmem [resolvable:$true] %s276
          %279 = dma.hbm_to_vmem [thread:$0]  %s5, 128, %s277, [#allocation7]
        $region32: #{tpu_custom_call.1} parent=11 // pred_fallthru
          _
        // Predicated region
        $region33: #{tpu_custom_call.1} parent=11 // pred_check
          %p280 = pneg %p169
        $region34: #{tpu_custom_call.1} parent=11 // pred_check_branch
          %282 = sbr.rel (%p280) target = $region36
        $region35: #{tpu_custom_call.1} parent=11 // pred_region
          _
        $region36: #{tpu_custom_call.1} parent=11 // pred_fallthru
          _
        // Predicated region
        $region37: #{tpu_custom_call.1} parent=11 // pred_check
          %p283 = pneg %p190
        $region38: #{tpu_custom_call.1} parent=11 // pred_check_branch
          %285 = sbr.rel (%p283) target = $region40
        $region39: #{tpu_custom_call.1} parent=11 // pred_region
          _
        $region40: #{tpu_custom_call.1} parent=11 // pred_fallthru
          _
        // Predicated region
        $region41: #{tpu_custom_call.1} parent=11 // pred_check
          %p286 = pneg %p211
        $region42: #{tpu_custom_call.1} parent=11 // pred_check_branch
          %288 = sbr.rel (%p286) target = $region44
        $region43: #{tpu_custom_call.1} parent=11 // pred_region
          _
        $region44: #{tpu_custom_call.1} parent=11 // pred_fallthru
          _
      $region12: #{tpu_custom_call.1} parent=5 // pred_fallthru
        _
      %p289 = scmp.lt.s32.totalorder %s17, 3
      // Predicated region
      $region45: #{tpu_custom_call.1} parent=5 // pred_check
        %p290 = pneg %p289
      $region46: #{tpu_custom_call.1} parent=5 // pred_check_branch
        %292 = sbr.rel (%p290) target = $region48
      $region47: #{tpu_custom_call.1} parent=5 // pred_region
        // Predicated region
        $region49: #{tpu_custom_call.1} parent=47 // pred_check
          %p293 = pneg %p100
        $region50: #{tpu_custom_call.1} parent=47 // pred_check_branch
          %295 = sbr.rel (%p293) target = $region52
        $region51: #{tpu_custom_call.1} parent=47 // pred_region
          %p296 = scmp.lt.s32.totalorder %s17, 2
          %s297 = scalar_select %p296, %s17, 2
          %s298 = smul.addr %s297, 4
          %s299 = smul.addr %s298, 8
          %s300 = scalar_lea.vmem %s3, %s299
        $region52: #{tpu_custom_call.1} parent=47 // pred_fallthru
          _
      $region48: #{tpu_custom_call.1} parent=5 // pred_fallthru
        _
      %p301 = scmp.le.s32.totalorder 1, %s17
      %p302 = scmp.lt.s32.totalorder %s17, 4
      %p303 = pnand %p301, %p302
      %p304 = pneg %p303
      // Predicated region
      $region53: #{tpu_custom_call.1} parent=5 // pred_check
        _
      $region54: #{tpu_custom_call.1} parent=5 // pred_check_branch
        %306 = sbr.rel (%p303) target = $region56
      $region55: #{tpu_custom_call.1} parent=5 // pred_region
        %s307 = ssub.s32 %s17, 1
        // Predicated region
        $region57: #{tpu_custom_call.1} parent=55 // pred_check
          %p308 = pneg %p127
        $region58: #{tpu_custom_call.1} parent=55 // pred_check_branch
          %310 = sbr.rel (%p308) target = $region60
        $region59: #{tpu_custom_call.1} parent=55 // pred_region
          %311 = dma.done [#allocation5], 512
        $region60: #{tpu_custom_call.1} parent=55 // pred_fallthru
          _
        // Predicated region
        $region61: #{tpu_custom_call.1} parent=55 // pred_check
          %p312 = pneg %p148
        $region62: #{tpu_custom_call.1} parent=55 // pred_check_branch
          %314 = sbr.rel (%p312) target = $region64
        $region63: #{tpu_custom_call.1} parent=55 // pred_region
          %315 = dma.done [#allocation7], 128
        $region64: #{tpu_custom_call.1} parent=55 // pred_fallthru
          _
        %p316 = pneg %p38
        %p317 = pneg %p35
        %p318 = pneg %p59
        %p319 = pneg %p56
        %p320 = pneg %p80
        %p321 = pneg %p77
        %p322 = scmp.lt.s32.totalorder %s22, 2
        %s323 = scalar_select %p322, %s22, 2
        %s324 = smul.addr %s323, 4
        %s325 = smul.addr %s324, 8
        %s326 = scalar_lea.vmem %s3, %s325
        %p327 = pneg %p106
        %p328 = pneg %p103
        %p329 = pneg %p127
        %p330 = pneg %p124
        %p331 = pneg %p148
        %p332 = pneg %p145
        %p333 = pneg %p169
        %p334 = pneg %p166
        %p335 = pneg %p190
        %p336 = pneg %p187
        %p337 = pneg %p211
        %p338 = pneg %p208
        %p339 = pneg %p232
        %p340 = pneg %p229
        %p341 = scmp.lt.s32.totalorder %s22, 2
        %s342 = scalar_select %p341, %s22, 2
        %s343 = smul.addr %s342, 4
        %s344 = smul.addr %s343, 8
        %s345 = scalar_lea.vmem %s3, %s344
        %p346 = scmp.eq.s32.totalorder %s22, 0
        // Predicated region
        $region65: #{tpu_custom_call.1} parent=55 // pred_check
          %p347 = pneg %p346
        $region66: #{tpu_custom_call.1} parent=55 // pred_check_branch
          %349 = sbr.rel (%p347) target = $region68
        $region67: #{tpu_custom_call.1} parent=55 // pred_region
          %v350 = vld [vmem:[%s1] sm:$0xff]
          %v351 = vld [vmem:[%s1 + $0x8] sm:$0xff]
          %v352 = vld [vmem:[%s1 + $0x10] sm:$0xff]
          %v353 = vld [vmem:[%s1 + $0x18] sm:$0xff]
          %v354 = vld [vmem:[%s1 + $0x20] sm:$0xff]
          %v355 = vld [vmem:[%s1 + $0x28] sm:$0xff]
          %v356 = vld [vmem:[%s1 + $0x30] sm:$0xff]
          %v357 = vld [vmem:[%s1 + $0x38] sm:$0xff]
          %vm358 = vcmask 261120
          %359 = vst.msk [vmem:[#allocation2] sm:$0xff] %vm358, %v350
          %360 = vst.msk [vmem:[#allocation2 + $0x8] sm:$0xff] %vm358, %v351
          %361 = vst.msk [vmem:[#allocation2 + $0x10] sm:$0xff] %vm358, %v352
          %362 = vst.msk [vmem:[#allocation2 + $0x18] sm:$0xff] %vm358, %v353
          %363 = vst.msk [vmem:[#allocation2 + $0x20] sm:$0xff] %vm358, %v354
          %364 = vst.msk [vmem:[#allocation2 + $0x28] sm:$0xff] %vm358, %v355
          %365 = vst.msk [vmem:[#allocation2 + $0x30] sm:$0xff] %vm358, %v356
          %366 = vst.msk [vmem:[#allocation2 + $0x38] sm:$0xff] %vm358, %v357
          %367 = vst.msk [vmem:[#allocation3] sm:$0xff] %vm358, 0.0
          %368 = vst.msk [vmem:[#allocation3 + $0x8] sm:$0xff] %vm358, 0.0
          %369 = vst.msk [vmem:[#allocation3 + $0x10] sm:$0xff] %vm358, 0.0
          %370 = vst.msk [vmem:[#allocation3 + $0x18] sm:$0xff] %vm358, 0.0
          %371 = vst.msk [vmem:[#allocation3 + $0x20] sm:$0xff] %vm358, 0.0
          %372 = vst.msk [vmem:[#allocation3 + $0x28] sm:$0xff] %vm358, 0.0
          %373 = vst.msk [vmem:[#allocation3 + $0x30] sm:$0xff] %vm358, 0.0
          %374 = vst.msk [vmem:[#allocation3 + $0x38] sm:$0xff] %vm358, 0.0
        $region68: #{tpu_custom_call.1} parent=55 // pred_fallthru
          _
        %p375 = scmp.gt.s32.totalorder %s22, 0
        // Predicated region
        $region69: #{tpu_custom_call.1} parent=55 // pred_check
          %p376 = pneg %p375
        $region70: #{tpu_custom_call.1} parent=55 // pred_check_branch
          %378 = sbr.rel (%p376) target = $region72
        $region71: #{tpu_custom_call.1} parent=55 // pred_region
          %v379 = vld [vmem:[%s0] sm:$0xff]
          %v380 = vld [vmem:[%s0 + $0x8] sm:$0xff]
          %v381 = vld [vmem:[%s0 + $0x10] sm:$0xff]
          %v382 = vld [vmem:[%s0 + $0x18] sm:$0xff]
          %v383 = vld [vmem:[%s0 + $0x20] sm:$0xff]
          %v384 = vld [vmem:[%s0 + $0x28] sm:$0xff]
          %v385 = vld [vmem:[%s0 + $0x30] sm:$0xff]
          %v386 = vld [vmem:[%s0 + $0x38] sm:$0xff]
          %v387 = vld [vmem:[#allocation2] sm:$0xff]
          %v388 = vld [vmem:[#allocation2 + $0x8] sm:$0xff]
          %v389 = vld [vmem:[#allocation2 + $0x10] sm:$0xff]
          %v390 = vld [vmem:[#allocation2 + $0x18] sm:$0xff]
          %v391 = vld [vmem:[#allocation2 + $0x20] sm:$0xff]
          %v392 = vld [vmem:[#allocation2 + $0x28] sm:$0xff]
          %v393 = vld [vmem:[#allocation2 + $0x30] sm:$0xff]
          %v394 = vld [vmem:[#allocation2 + $0x38] sm:$0xff]
          %vm395 = vcmask 523264
          %v397 = vsel %vm395, %v379, 0
          %v400 = vsel %vm395, %v380, 0
          %v403 = vsel %vm395, %v381, 0
          %v406 = vsel %vm395, %v382, 0
          %v409 = vsel %vm395, %v383, 0
          %v412 = vsel %vm395, %v384, 0
          %v415 = vsel %vm395, %v385, 0
          %v418 = vsel %vm395, %v386, 0
          %420 = vmatprep.subr.mxu0 0.0
          %421 = vmatpush1.msra.mxu0 %v387
          %422 = vmatprep.subr.mxu0 0.0
          %423 = vmatpush1.msra.mxu0 %v388
          %424 = vmatprep.subr.mxu0 0.0
          %425 = vmatpush1.msra.mxu0 %v389
          %426 = vmatprep.subr.mxu0 0.0
          %427 = vmatpush1.msra.mxu0 %v390
          %428 = vmatprep.subr.mxu0 0.0
          %429 = vmatpush1.msra.mxu0 %v391
          %430 = vmatprep.subr.mxu0 0.0
          %431 = vmatpush1.msra.mxu0 %v392
          %432 = vmatprep.subr.mxu0 0.0
          %433 = vmatpush1.msra.mxu0 %v393
          %434 = vmatprep.subr.mxu0 0.0
          %435 = vmatpush1.msra.mxu0 %v394
          %436 = vmatprep.subr.mxu0 0.0
          %437 = vmatpush1.msra.mxu0 0.0
          %438 = vmatprep.subr.mxu0 0.0
          %439 = vmatpush1.msra.mxu0 0.0
          %440 = vmatprep.subr.mxu0 0.0
          %441 = vmatpush1.msra.mxu0 0.0
          %442 = vmatprep.subr.mxu0 0.0
          %443 = vmatpush1.msra.mxu0 0.0
          %444 = vmatprep.subr.mxu0 0.0
          %445 = vmatpush1.msra.mxu0 0.0
          %446 = vmatprep.subr.mxu0 0.0
          %447 = vmatpush1.msra.mxu0 0.0
          %448 = vmatprep.subr.mxu0 0.0
          %449 = vmatpush1.msra.mxu0 0.0
          %450 = vmatprep.subr.mxu0 0.0
          %451 = vmatpush1.msra.mxu0 0.0
          %452 = vmatprep.subr.mxu0 0.0
          %453 = vmatpush1.msra.mxu0 0.0
          %454 = vmatprep.subr.mxu0 0.0
          %455 = vmatpush1.msra.mxu0 0.0
          %456 = vmatprep.subr.mxu0 0.0
          %457 = vmatpush1.msra.mxu0 0.0
          %458 = vmatprep.subr.mxu0 0.0
          %459 = vmatpush1.msra.mxu0 0.0
          %460 = vmatprep.subr.mxu0 0.0
          %461 = vmatpush1.msra.mxu0 0.0
          %462 = vmatprep.subr.mxu0 0.0
          %463 = vmatpush1.msra.mxu0 0.0
          %464 = vmatprep.subr.mxu0 0.0
          %465 = vmatpush1.msra.mxu0 0.0
          %466 = vmatprep.subr.mxu0 0.0
          %467 = vmatpush1.msra.mxu0 0.0
          %468 = vmatprep.subr.mxu0 0.0
          %469 = vmatpush1.msra.mxu0 0.0
          %470 = vmatprep.subr.mxu0 0.0
          %471 = vmatpush1.msra.mxu0 0.0
          %472 = vmatprep.subr.mxu0 0.0
          %473 = vmatpush1.msra.mxu0 0.0
          %474 = vmatprep.subr.mxu0 0.0
          %475 = vmatpush1.msra.mxu0 0.0
          %476 = vmatprep.subr.mxu0 0.0
          %477 = vmatpush1.msra.mxu0 0.0
          %478 = vmatprep.subr.mxu0 0.0
          %479 = vmatpush1.msra.mxu0 0.0
          %480 = vmatprep.subr.mxu0 0.0
          %481 = vmatpush1.msra.mxu0 0.0
          %482 = vmatprep.subr.mxu0 0.0
          %483 = vmatpush1.msra.mxu0 0.0
          %484 = vmatprep.mubr.f32.mxu0 0.0
          %485 = vmatmul.mubr.f32.gmra.mrb[0].mxu0 %v397
          %v486 = vpop.f32.mrb[0].mxu0
          %v487 = vadd.f32 0.0, %v486
          %v488 = vpop.f32.mrb[0].mxu0
          %489 = vmatprep.mubr.f32.mxu0 0.0
          %490 = vmatmul.mubr.f32.gmra.mrb[0].mxu0 %v400
          %v491 = vpop.f32.mrb[0].mxu0
          %v492 = vadd.f32 0.0, %v491
          %v493 = vpop.f32.mrb[0].mxu0
          %494 = vmatprep.mubr.f32.mxu0 0.0
          %495 = vmatmul.mubr.f32.gmra.mrb[0].mxu0 %v403
          %v496 = vpop.f32.mrb[0].mxu0
          %v497 = vadd.f32 0.0, %v496
          %v498 = vpop.f32.mrb[0].mxu0
          %499 = vmatprep.mubr.f32.mxu0 0.0
          %500 = vmatmul.mubr.f32.gmra.mrb[0].mxu0 %v406
          %v501 = vpop.f32.mrb[0].mxu0
          %v502 = vadd.f32 0.0, %v501
          %v503 = vpop.f32.mrb[0].mxu0
          %504 = vmatprep.mubr.f32.mxu0 0.0
          %505 = vmatmul.mubr.f32.gmra.mrb[0].mxu0 %v409
          %v506 = vpop.f32.mrb[0].mxu0
          %v507 = vadd.f32 0.0, %v506
          %v508 = vpop.f32.mrb[0].mxu0
          %509 = vmatprep.mubr.f32.mxu0 0.0
          %510 = vmatmul.mubr.f32.gmra.mrb[0].mxu0 %v412
          %v511 = vpop.f32.mrb[0].mxu0
          %v512 = vadd.f32 0.0, %v511
          %v513 = vpop.f32.mrb[0].mxu0
          %514 = vmatprep.mubr.f32.mxu0 0.0
          %515 = vmatmul.mubr.f32.gmra.mrb[0].mxu0 %v415
          %v516 = vpop.f32.mrb[0].mxu0
          %v517 = vadd.f32 0.0, %v516
          %v518 = vpop.f32.mrb[0].mxu0
          %519 = vmatprep.mubr.f32.mxu0 0.0
          %520 = vmatmul.mubr.f32.gmra.mrb[0].mxu0 %v418
          %v521 = vpop.f32.mrb[0].mxu0
          %v522 = vadd.f32 0.0, %v521
          %v523 = vpop.f32.mrb[0].mxu0
          %524 = vdwg.mxu0
          %vm525 = vcmask 261120
          %526 = vst.msk [vmem:[#allocation2] sm:$0xff] %vm525, %v487
          %527 = vst.msk [vmem:[#allocation2 + $0x8] sm:$0xff] %vm525, %v492
          %528 = vst.msk [vmem:[#allocation2 + $0x10] sm:$0xff] %vm525, %v497
          %529 = vst.msk [vmem:[#allocation2 + $0x18] sm:$0xff] %vm525, %v502
          %530 = vst.msk [vmem:[#allocation2 + $0x20] sm:$0xff] %vm525, %v507
          %531 = vst.msk [vmem:[#allocation2 + $0x28] sm:$0xff] %vm525, %v512
          %532 = vst.msk [vmem:[#allocation2 + $0x30] sm:$0xff] %vm525, %v517
          %533 = vst.msk [vmem:[#allocation2 + $0x38] sm:$0xff] %vm525, %v522
        $region72: #{tpu_custom_call.1} parent=55 // pred_fallthru
          _
        %v534 = vld [vmem:[#allocation3] sm:$0xff]
        %v535 = vld [vmem:[#allocation3 + $0x8] sm:$0xff]
        %v536 = vld [vmem:[#allocation3 + $0x10] sm:$0xff]
        %v537 = vld [vmem:[#allocation3 + $0x18] sm:$0xff]
        %v538 = vld [vmem:[#allocation3 + $0x20] sm:$0xff]
        %v539 = vld [vmem:[#allocation3 + $0x28] sm:$0xff]
        %v540 = vld [vmem:[#allocation3 + $0x30] sm:$0xff]
        %v541 = vld [vmem:[#allocation3 + $0x38] sm:$0xff]
        %v542 = vld [vmem:[#allocation2] sm:$0xff]
        %v543 = vld [vmem:[#allocation2 + $0x8] sm:$0xff]
        %v544 = vld [vmem:[#allocation2 + $0x10] sm:$0xff]
        %v545 = vld [vmem:[#allocation2 + $0x18] sm:$0xff]
        %v546 = vld [vmem:[#allocation2 + $0x20] sm:$0xff]
        %v547 = vld [vmem:[#allocation2 + $0x28] sm:$0xff]
        %v548 = vld [vmem:[#allocation2 + $0x30] sm:$0xff]
        %v549 = vld [vmem:[#allocation2 + $0x38] sm:$0xff]
        %v550 = vld [vmem:[%s345] sm:$0xff]
        %v551 = vld [vmem:[%s345 + $0x8] sm:$0xff]
        %v552 = vld [vmem:[%s345 + $0x10] sm:$0xff]
        %v553 = vld [vmem:[%s345 + $0x18] sm:$0xff]
        %vm554 = vcmask 261120
        %v556 = vsel %vm554, %v542, 0
        %v559 = vsel %vm554, %v543, 0
        %v562 = vsel %vm554, %v544, 0
        %v565 = vsel %vm554, %v545, 0
        %v568 = vsel %vm554, %v546, 0
        %v571 = vsel %vm554, %v547, 0
        %v574 = vsel %vm554, %v548, 0
        %v577 = vsel %vm554, %v549, 0
        %579 = vmatprep.subr.mxu0 0.0
        %580 = vmatpush1.msra.mxu0 %v550
        %581 = vmatprep.subr.mxu0 0.0
        %582 = vmatpush1.msra.mxu0 %v551
        %583 = vmatprep.subr.mxu0 0.0
        %584 = vmatpush1.msra.mxu0 %v552
        %585 = vmatprep.subr.mxu0 0.0
        %586 = vmatpush1.msra.mxu0 %v553
        %587 = vmatprep.subr.mxu0 0.0
        %588 = vmatpush1.msra.mxu0 0.0
        %589 = vmatprep.subr.mxu0 0.0
        %590 = vmatpush1.msra.mxu0 0.0
        %591 = vmatprep.subr.mxu0 0.0
        %592 = vmatpush1.msra.mxu0 0.0
        %593 = vmatprep.subr.mxu0 0.0
        %594 = vmatpush1.msra.mxu0 0.0
        %595 = vmatprep.subr.mxu0 0.0
        %596 = vmatpush1.msra.mxu0 0.0
        %597 = vmatprep.subr.mxu0 0.0
        %598 = vmatpush1.msra.mxu0 0.0
        %599 = vmatprep.subr.mxu0 0.0
        %600 = vmatpush1.msra.mxu0 0.0
        %601 = vmatprep.subr.mxu0 0.0
        %602 = vmatpush1.msra.mxu0 0.0
        %603 = vmatprep.subr.mxu0 0.0
        %604 = vmatpush1.msra.mxu0 0.0
        %605 = vmatprep.subr.mxu0 0.0
        %606 = vmatpush1.msra.mxu0 0.0
        %607 = vmatprep.subr.mxu0 0.0
        %608 = vmatpush1.msra.mxu0 0.0
        %609 = vmatprep.subr.mxu0 0.0
        %610 = vmatpush1.msra.mxu0 0.0
        %611 = vmatprep.subr.mxu0 0.0
        %612 = vmatpush1.msra.mxu0 0.0
        %613 = vmatprep.subr.mxu0 0.0
        %614 = vmatpush1.msra.mxu0 0.0
        %615 = vmatprep.subr.mxu0 0.0
        %616 = vmatpush1.msra.mxu0 0.0
        %617 = vmatprep.subr.mxu0 0.0
        %618 = vmatpush1.msra.mxu0 0.0
        %619 = vmatprep.subr.mxu0 0.0
        %620 = vmatpush1.msra.mxu0 0.0
        %621 = vmatprep.subr.mxu0 0.0
        %622 = vmatpush1.msra.mxu0 0.0
        %623 = vmatprep.subr.mxu0 0.0
        %624 = vmatpush1.msra.mxu0 0.0
        %625 = vmatprep.subr.mxu0 0.0
        %626 = vmatpush1.msra.mxu0 0.0
        %627 = vmatprep.subr.mxu0 0.0
        %628 = vmatpush1.msra.mxu0 0.0
        %629 = vmatprep.subr.mxu0 0.0
        %630 = vmatpush1.msra.mxu0 0.0
        %631 = vmatprep.subr.mxu0 0.0
        %632 = vmatpush1.msra.mxu0 0.0
        %633 = vmatprep.subr.mxu0 0.0
        %634 = vmatpush1.msra.mxu0 0.0
        %635 = vmatprep.subr.mxu0 0.0
        %636 = vmatpush1.msra.mxu0 0.0
        %637 = vmatprep.subr.mxu0 0.0
        %638 = vmatpush1.msra.mxu0 0.0
        %639 = vmatprep.subr.mxu0 0.0
        %640 = vmatpush1.msra.mxu0 0.0
        %641 = vmatprep.subr.mxu0 0.0
        %642 = vmatpush1.msra.mxu0 0.0
        %643 = vmatprep.mubr.f32.mxu0 0.0
        %644 = vmatmul.mubr.f32.gmra.mrb[0].mxu0 %v556
        %v645 = vpop.f32.mrb[0].mxu0
        %v646 = vadd.f32 0.0, %v645
        %v647 = vpop.f32.mrb[0].mxu0
        %648 = vmatprep.mubr.f32.mxu0 0.0
        %649 = vmatmul.mubr.f32.gmra.mrb[0].mxu0 %v559
        %v650 = vpop.f32.mrb[0].mxu0
        %v651 = vadd.f32 0.0, %v650
        %v652 = vpop.f32.mrb[0].mxu0
        %653 = vmatprep.mubr.f32.mxu0 0.0
        %654 = vmatmul.mubr.f32.gmra.mrb[0].mxu0 %v562
        %v655 = vpop.f32.mrb[0].mxu0
        %v656 = vadd.f32 0.0, %v655
        %v657 = vpop.f32.mrb[0].mxu0
        %658 = vmatprep.mubr.f32.mxu0 0.0
        %659 = vmatmul.mubr.f32.gmra.mrb[0].mxu0 %v565
        %v660 = vpop.f32.mrb[0].mxu0
        %v661 = vadd.f32 0.0, %v660
        %v662 = vpop.f32.mrb[0].mxu0
        %663 = vmatprep.mubr.f32.mxu0 0.0
        %664 = vmatmul.mubr.f32.gmra.mrb[0].mxu0 %v568
        %v665 = vpop.f32.mrb[0].mxu0
        %v666 = vadd.f32 0.0, %v665
        %v667 = vpop.f32.mrb[0].mxu0
        %668 = vmatprep.mubr.f32.mxu0 0.0
        %669 = vmatmul.mubr.f32.gmra.mrb[0].mxu0 %v571
        %v670 = vpop.f32.mrb[0].mxu0
        %v671 = vadd.f32 0.0, %v670
        %v672 = vpop.f32.mrb[0].mxu0
        %673 = vmatprep.mubr.f32.mxu0 0.0
        %674 = vmatmul.mubr.f32.gmra.mrb[0].mxu0 %v574
        %v675 = vpop.f32.mrb[0].mxu0
        %v676 = vadd.f32 0.0, %v675
        %v677 = vpop.f32.mrb[0].mxu0
        %678 = vmatprep.mubr.f32.mxu0 0.0
        %679 = vmatmul.mubr.f32.gmra.mrb[0].mxu0 %v577
        %v680 = vpop.f32.mrb[0].mxu0
        %v681 = vadd.f32 0.0, %v680
        %v682 = vpop.f32.mrb[0].mxu0
        %683 = vdwg.mxu0
        %v684 = vadd.f32 %v534, %v646
        %v685 = vadd.f32 %v535, %v651
        %v686 = vadd.f32 %v536, %v656
        %v687 = vadd.f32 %v537, %v661
        %v688 = vadd.f32 %v538, %v666
        %v689 = vadd.f32 %v539, %v671
        %v690 = vadd.f32 %v540, %v676
        %v691 = vadd.f32 %v541, %v681
        %692 = vst.msk [vmem:[#allocation3] sm:$0xff] %vm554, %v684
        %693 = vst.msk [vmem:[#allocation3 + $0x8] sm:$0xff] %vm554, %v685
        %694 = vst.msk [vmem:[#allocation3 + $0x10] sm:$0xff] %vm554, %v686
        %695 = vst.msk [vmem:[#allocation3 + $0x18] sm:$0xff] %vm554, %v687
        %696 = vst.msk [vmem:[#allocation3 + $0x20] sm:$0xff] %vm554, %v688
        %697 = vst.msk [vmem:[#allocation3 + $0x28] sm:$0xff] %vm554, %v689
        %698 = vst.msk [vmem:[#allocation3 + $0x30] sm:$0xff] %vm554, %v690
        %699 = vst.msk [vmem:[#allocation3 + $0x38] sm:$0xff] %vm554, %v691
        %p700 = scmp.eq.s32.totalorder %s22, 2
        // Predicated region
        $region73: #{tpu_custom_call.1} parent=55 // pred_check
          %p701 = pneg %p700
        $region74: #{tpu_custom_call.1} parent=55 // pred_check_branch
          %703 = sbr.rel (%p701) target = $region76
        $region75: #{tpu_custom_call.1} parent=55 // pred_region
          %v704 = vld [vmem:[#allocation3] sm:$0xff]
          %v705 = vld [vmem:[#allocation3 + $0x8] sm:$0xff]
          %v706 = vld [vmem:[#allocation3 + $0x10] sm:$0xff]
          %v707 = vld [vmem:[#allocation3 + $0x18] sm:$0xff]
          %v708 = vld [vmem:[#allocation3 + $0x20] sm:$0xff]
          %v709 = vld [vmem:[#allocation3 + $0x28] sm:$0xff]
          %v710 = vld [vmem:[#allocation3 + $0x30] sm:$0xff]
          %v711 = vld [vmem:[#allocation3 + $0x38] sm:$0xff]
          %v712 = vtanh.pop %v704
          %v713 = vtanh.pop %v705
          %v714 = vtanh.pop %v706
          %v715 = vtanh.pop %v707
          %v716 = vtanh.pop %v708
          %v717 = vtanh.pop %v709
          %v718 = vtanh.pop %v710
          %v719 = vtanh.pop %v711
          %v720 = vld [vmem:[#allocation4] sm:$0xff]
          %v721 = vld [vmem:[#allocation4 + $0x8] sm:$0xff]
          %v722 = vld [vmem:[#allocation4 + $0x10] sm:$0xff]
          %v723 = vld [vmem:[#allocation4 + $0x18] sm:$0xff]
          %v724 = vld [vmem:[%s2] sm:$0xff]
          %v725 = vld [vmem:[%s2 + $0x8] sm:$0xff]
          %v726 = vld [vmem:[%s2 + $0x10] sm:$0xff]
          %v727 = vld [vmem:[%s2 + $0x18] sm:$0xff]
          %v728 = vld [vmem:[%s2 + $0x20] sm:$0xff]
          %v729 = vld [vmem:[%s2 + $0x28] sm:$0xff]
          %v730 = vld [vmem:[%s2 + $0x30] sm:$0xff]
          %v731 = vld [vmem:[%s2 + $0x38] sm:$0xff]
          %v732 = vld [vmem:[#allocation6] sm:$0xff]
          %vm733 = vcmask 64512
          %v735 = vsel %vm733, %v724, 0
          %v738 = vsel %vm733, %v725, 0
          %v741 = vsel %vm733, %v726, 0
          %v744 = vsel %vm733, %v727, 0
          %v747 = vsel %vm733, %v728, 0
          %v750 = vsel %vm733, %v729, 0
          %v753 = vsel %vm733, %v730, 0
          %v756 = vsel %vm733, %v731, 0
          %758 = vmatprep.subr.mxu0 0.0
          %759 = vmatpush1.msra.mxu0 %v732
          %760 = vmatprep.subr.mxu0 0.0
          %761 = vmatpush1.msra.mxu0 0.0
          %762 = vmatprep.subr.mxu0 0.0
          %763 = vmatpush1.msra.mxu0 0.0
          %764 = vmatprep.subr.mxu0 0.0
          %765 = vmatpush1.msra.mxu0 0.0
          %766 = vmatprep.subr.mxu0 0.0
          %767 = vmatpush1.msra.mxu0 0.0
          %768 = vmatprep.subr.mxu0 0.0
          %769 = vmatpush1.msra.mxu0 0.0
          %770 = vmatprep.subr.mxu0 0.0
          %771 = vmatpush1.msra.mxu0 0.0
          %772 = vmatprep.subr.mxu0 0.0
          %773 = vmatpush1.msra.mxu0 0.0
          %774 = vmatprep.subr.mxu0 0.0
          %775 = vmatpush1.msra.mxu0 0.0
          %776 = vmatprep.subr.mxu0 0.0
          %777 = vmatpush1.msra.mxu0 0.0
          %778 = vmatprep.subr.mxu0 0.0
          %779 = vmatpush1.msra.mxu0 0.0
          %780 = vmatprep.subr.mxu0 0.0
          %781 = vmatpush1.msra.mxu0 0.0
          %782 = vmatprep.subr.mxu0 0.0
          %783 = vmatpush1.msra.mxu0 0.0
          %784 = vmatprep.subr.mxu0 0.0
          %785 = vmatpush1.msra.mxu0 0.0
          %786 = vmatprep.subr.mxu0 0.0
          %787 = vmatpush1.msra.mxu0 0.0
          %788 = vmatprep.subr.mxu0 0.0
          %789 = vmatpush1.msra.mxu0 0.0
          %790 = vmatprep.subr.mxu0 0.0
          %791 = vmatpush1.msra.mxu0 0.0
          %792 = vmatprep.subr.mxu0 0.0
          %793 = vmatpush1.msra.mxu0 0.0
          %794 = vmatprep.subr.mxu0 0.0
          %795 = vmatpush1.msra.mxu0 0.0
          %796 = vmatprep.subr.mxu0 0.0
          %797 = vmatpush1.msra.mxu0 0.0
          %798 = vmatprep.subr.mxu0 0.0
          %799 = vmatpush1.msra.mxu0 0.0
          %800 = vmatprep.subr.mxu0 0.0
          %801 = vmatpush1.msra.mxu0 0.0
          %802 = vmatprep.subr.mxu0 0.0
          %803 = vmatpush1.msra.mxu0 0.0
          %804 = vmatprep.subr.mxu0 0.0
          %805 = vmatpush1.msra.mxu0 0.0
          %806 = vmatprep.subr.mxu0 0.0
          %807 = vmatpush1.msra.mxu0 0.0
          %808 = vmatprep.subr.mxu0 0.0
          %809 = vmatpush1.msra.mxu0 0.0
          %810 = vmatprep.subr.mxu0 0.0
          %811 = vmatpush1.msra.mxu0 0.0
          %812 = vmatprep.subr.mxu0 0.0
          %813 = vmatpush1.msra.mxu0 0.0
          %814 = vmatprep.subr.mxu0 0.0
          %815 = vmatpush1.msra.mxu0 0.0
          %816 = vmatprep.subr.mxu0 0.0
          %817 = vmatpush1.msra.mxu0 0.0
          %818 = vmatprep.subr.mxu0 0.0
          %819 = vmatpush1.msra.mxu0 0.0
          %820 = vmatprep.subr.mxu0 0.0
          %821 = vmatpush1.msra.mxu0 0.0
          %822 = vmatprep.mubr.f32.mxu0 0.0
          %823 = vmatmul.mubr.f32.gmra.mrb[0].mxu0 %v735
          %v824 = vpop.f32.mrb[0].mxu0
          %v825 = vadd.f32 0.0, %v824
          %v826 = vpop.f32.mrb[0].mxu0
          %827 = vmatprep.mubr.f32.mxu0 0.0
          %828 = vmatmul.mubr.f32.gmra.mrb[0].mxu0 %v738
          %v829 = vpop.f32.mrb[0].mxu0
          %v830 = vadd.f32 0.0, %v829
          %v831 = vpop.f32.mrb[0].mxu0
          %832 = vmatprep.mubr.f32.mxu0 0.0
          %833 = vmatmul.mubr.f32.gmra.mrb[0].mxu0 %v741
          %v834 = vpop.f32.mrb[0].mxu0
          %v835 = vadd.f32 0.0, %v834
          %v836 = vpop.f32.mrb[0].mxu0
          %837 = vmatprep.mubr.f32.mxu0 0.0
          %838 = vmatmul.mubr.f32.gmra.mrb[0].mxu0 %v744
          %v839 = vpop.f32.mrb[0].mxu0
          %v840 = vadd.f32 0.0, %v839
          %v841 = vpop.f32.mrb[0].mxu0
          %842 = vmatprep.mubr.f32.mxu0 0.0
          %843 = vmatmul.mubr.f32.gmra.mrb[0].mxu0 %v747
          %v844 = vpop.f32.mrb[0].mxu0
          %v845 = vadd.f32 0.0, %v844
          %v846 = vpop.f32.mrb[0].mxu0
          %847 = vmatprep.mubr.f32.mxu0 0.0
          %848 = vmatmul.mubr.f32.gmra.mrb[0].mxu0 %v750
          %v849 = vpop.f32.mrb[0].mxu0
          %v850 = vadd.f32 0.0, %v849
          %v851 = vpop.f32.mrb[0].mxu0
          %852 = vmatprep.mubr.f32.mxu0 0.0
          %853 = vmatmul.mubr.f32.gmra.mrb[0].mxu0 %v753
          %v854 = vpop.f32.mrb[0].mxu0
          %v855 = vadd.f32 0.0, %v854
          %v856 = vpop.f32.mrb[0].mxu0
          %857 = vmatprep.mubr.f32.mxu0 0.0
          %858 = vmatmul.mubr.f32.gmra.mrb[0].mxu0 %v756
          %v859 = vpop.f32.mrb[0].mxu0
          %v860 = vadd.f32 0.0, %v859
          %v861 = vpop.f32.mrb[0].mxu0
          %862 = vdwg.mxu0
          %v864 = vsel %vm554, %v712, 0
          %v867 = vsel %vm554, %v713, 0
          %v870 = vsel %vm554, %v714, 0
          %v873 = vsel %vm554, %v715, 0
          %v876 = vsel %vm554, %v716, 0
          %v879 = vsel %vm554, %v717, 0
          %v882 = vsel %vm554, %v718, 0
          %v885 = vsel %vm554, %v719, 0
          %887 = vmatprep.subr.mxu0 0.0
          %888 = vmatpush1.msra.mxu0 %v720
          %889 = vmatprep.subr.mxu0 0.0
          %890 = vmatpush1.msra.mxu0 %v721
          %891 = vmatprep.subr.mxu0 0.0
          %892 = vmatpush1.msra.mxu0 %v722
          %893 = vmatprep.subr.mxu0 0.0
          %894 = vmatpush1.msra.mxu0 %v723
          %895 = vmatprep.subr.mxu0 0.0
          %896 = vmatpush1.msra.mxu0 0.0
          %897 = vmatprep.subr.mxu0 0.0
          %898 = vmatpush1.msra.mxu0 0.0
          %899 = vmatprep.subr.mxu0 0.0
          %900 = vmatpush1.msra.mxu0 0.0
          %901 = vmatprep.subr.mxu0 0.0
          %902 = vmatpush1.msra.mxu0 0.0
          %903 = vmatprep.subr.mxu0 0.0
          %904 = vmatpush1.msra.mxu0 0.0
          %905 = vmatprep.subr.mxu0 0.0
          %906 = vmatpush1.msra.mxu0 0.0
          %907 = vmatprep.subr.mxu0 0.0
          %908 = vmatpush1.msra.mxu0 0.0
          %909 = vmatprep.subr.mxu0 0.0
          %910 = vmatpush1.msra.mxu0 0.0
          %911 = vmatprep.subr.mxu0 0.0
          %912 = vmatpush1.msra.mxu0 0.0
          %913 = vmatprep.subr.mxu0 0.0
          %914 = vmatpush1.msra.mxu0 0.0
          %915 = vmatprep.subr.mxu0 0.0
          %916 = vmatpush1.msra.mxu0 0.0
          %917 = vmatprep.subr.mxu0 0.0
          %918 = vmatpush1.msra.mxu0 0.0
          %919 = vmatprep.subr.mxu0 0.0
          %920 = vmatpush1.msra.mxu0 0.0
          %921 = vmatprep.subr.mxu0 0.0
          %922 = vmatpush1.msra.mxu0 0.0
          %923 = vmatprep.subr.mxu0 0.0
          %924 = vmatpush1.msra.mxu0 0.0
          %925 = vmatprep.subr.mxu0 0.0
          %926 = vmatpush1.msra.mxu0 0.0
          %927 = vmatprep.subr.mxu0 0.0
          %928 = vmatpush1.msra.mxu0 0.0
          %929 = vmatprep.subr.mxu0 0.0
          %930 = vmatpush1.msra.mxu0 0.0
          %931 = vmatprep.subr.mxu0 0.0
          %932 = vmatpush1.msra.mxu0 0.0
          %933 = vmatprep.subr.mxu0 0.0
          %934 = vmatpush1.msra.mxu0 0.0
          %935 = vmatprep.subr.mxu0 0.0
          %936 = vmatpush1.msra.mxu0 0.0
          %937 = vmatprep.subr.mxu0 0.0
          %938 = vmatpush1.msra.mxu0 0.0
          %939 = vmatprep.subr.mxu0 0.0
          %940 = vmatpush1.msra.mxu0 0.0
          %941 = vmatprep.subr.mxu0 0.0
          %942 = vmatpush1.msra.mxu0 0.0
          %943 = vmatprep.subr.mxu0 0.0
          %944 = vmatpush1.msra.mxu0 0.0
          %945 = vmatprep.subr.mxu0 0.0
          %946 = vmatpush1.msra.mxu0 0.0
          %947 = vmatprep.subr.mxu0 0.0
          %948 = vmatpush1.msra.mxu0 0.0
          %949 = vmatprep.subr.mxu0 0.0
          %950 = vmatpush1.msra.mxu0 0.0
          %951 = vmatprep.mubr.f32.mxu0 0.0
          %952 = vmatmul.mubr.f32.gmra.mrb[0].mxu0 %v864
          %v953 = vpop.f32.mrb[0].mxu0
          %v954 = vadd.f32 %v825, %v953
          %v955 = vpop.f32.mrb[0].mxu0
          %956 = vmatprep.mubr.f32.mxu0 0.0
          %957 = vmatmul.mubr.f32.gmra.mrb[0].mxu0 %v867
          %v958 = vpop.f32.mrb[0].mxu0
          %v959 = vadd.f32 %v830, %v958
          %v960 = vpop.f32.mrb[0].mxu0
          %961 = vmatprep.mubr.f32.mxu0 0.0
          %962 = vmatmul.mubr.f32.gmra.mrb[0].mxu0 %v870
          %v963 = vpop.f32.mrb[0].mxu0
          %v964 = vadd.f32 %v835, %v963
          %v965 = vpop.f32.mrb[0].mxu0
          %966 = vmatprep.mubr.f32.mxu0 0.0
          %967 = vmatmul.mubr.f32.gmra.mrb[0].mxu0 %v873
          %v968 = vpop.f32.mrb[0].mxu0
          %v969 = vadd.f32 %v840, %v968
          %v970 = vpop.f32.mrb[0].mxu0
          %971 = vmatprep.mubr.f32.mxu0 0.0
          %972 = vmatmul.mubr.f32.gmra.mrb[0].mxu0 %v876
          %v973 = vpop.f32.mrb[0].mxu0
          %v974 = vadd.f32 %v845, %v973
          %v975 = vpop.f32.mrb[0].mxu0
          %976 = vmatprep.mubr.f32.mxu0 0.0
          %977 = vmatmul.mubr.f32.gmra.mrb[0].mxu0 %v879
          %v978 = vpop.f32.mrb[0].mxu0
          %v979 = vadd.f32 %v850, %v978
          %v980 = vpop.f32.mrb[0].mxu0
          %981 = vmatprep.mubr.f32.mxu0 0.0
          %982 = vmatmul.mubr.f32.gmra.mrb[0].mxu0 %v882
          %v983 = vpop.f32.mrb[0].mxu0
          %v984 = vadd.f32 %v855, %v983
          %v985 = vpop.f32.mrb[0].mxu0
          %986 = vmatprep.mubr.f32.mxu0 0.0
          %987 = vmatmul.mubr.f32.gmra.mrb[0].mxu0 %v885
          %v988 = vpop.f32.mrb[0].mxu0
          %v989 = vadd.f32 %v860, %v988
          %v990 = vpop.f32.mrb[0].mxu0
          %991 = vdwg.mxu0
          %v992 = vld [vmem:[%s6] sm:$0x1]
          %v994 = vlaneseq
          %v995 = vshrl.u32 %v994, 7
          %v996 = vsub.s32 0, %v995
          %v997 = vrot.slane %v992, %v996
          %v999 = vadd.f32 %v954, %v997
          %v1000 = vadd.f32 %v959, %v997
          %v1001 = vadd.f32 %v964, %v997
          %v1002 = vadd.f32 %v969, %v997
          %v1003 = vadd.f32 %v974, %v997
          %v1004 = vadd.f32 %v979, %v997
          %v1005 = vadd.f32 %v984, %v997
          %v1006 = vadd.f32 %v989, %v997
          %v1007 = vmax.f32 %v999, 0.0
          %v1008 = vmax.f32 %v1000, 0.0
          %v1009 = vmax.f32 %v1001, 0.0
          %v1010 = vmax.f32 %v1002, 0.0
          %v1011 = vmax.f32 %v1003, 0.0
          %v1012 = vmax.f32 %v1004, 0.0
          %v1013 = vmax.f32 %v1005, 0.0
          %v1014 = vmax.f32 %v1006, 0.0
          %v1015 = vld [vmem:[%s7] sm:$0xff]
          %v1016 = vld [vmem:[%s7 + $0x8] sm:$0xff]
          %v1017 = vld [vmem:[%s7 + $0x10] sm:$0xff]
          %v1018 = vld [vmem:[%s7 + $0x18] sm:$0xff]
          %v1019 = vld [vmem:[%s8] sm:$0x1]
          %v1021 = vlaneseq
          %v1022 = vshrl.u32 %v1021, 7
          %v1023 = vsub.s32 0, %v1022
          %v1024 = vrot.slane %v1019, %v1023
          %v1027 = vsel %vm554, %v1007, 0
          %v1030 = vsel %vm554, %v1008, 0
          %v1033 = vsel %vm554, %v1009, 0
          %v1036 = vsel %vm554, %v1010, 0
          %v1039 = vsel %vm554, %v1011, 0
          %v1042 = vsel %vm554, %v1012, 0
          %v1045 = vsel %vm554, %v1013, 0
          %v1048 = vsel %vm554, %v1014, 0
          %1050 = vmatprep.subr.mxu0 0.0
          %1051 = vmatpush1.msra.mxu0 %v1015
          %1052 = vmatprep.subr.mxu0 0.0
          %1053 = vmatpush1.msra.mxu0 %v1016
          %1054 = vmatprep.subr.mxu0 0.0
          %1055 = vmatpush1.msra.mxu0 %v1017
          %1056 = vmatprep.subr.mxu0 0.0
          %1057 = vmatpush1.msra.mxu0 %v1018
          %1058 = vmatprep.subr.mxu0 0.0
          %1059 = vmatpush1.msra.mxu0 0.0
          %1060 = vmatprep.subr.mxu0 0.0
          %1061 = vmatpush1.msra.mxu0 0.0
          %1062 = vmatprep.subr.mxu0 0.0
          %1063 = vmatpush1.msra.mxu0 0.0
          %1064 = vmatprep.subr.mxu0 0.0
          %1065 = vmatpush1.msra.mxu0 0.0
          %1066 = vmatprep.subr.mxu0 0.0
          %1067 = vmatpush1.msra.mxu0 0.0
          %1068 = vmatprep.subr.mxu0 0.0
          %1069 = vmatpush1.msra.mxu0 0.0
          %1070 = vmatprep.subr.mxu0 0.0
          %1071 = vmatpush1.msra.mxu0 0.0
          %1072 = vmatprep.subr.mxu0 0.0
          %1073 = vmatpush1.msra.mxu0 0.0
          %1074 = vmatprep.subr.mxu0 0.0
          %1075 = vmatpush1.msra.mxu0 0.0
          %1076 = vmatprep.subr.mxu0 0.0
          %1077 = vmatpush1.msra.mxu0 0.0
          %1078 = vmatprep.subr.mxu0 0.0
          %1079 = vmatpush1.msra.mxu0 0.0
          %1080 = vmatprep.subr.mxu0 0.0
          %1081 = vmatpush1.msra.mxu0 0.0
          %1082 = vmatprep.subr.mxu0 0.0
          %1083 = vmatpush1.msra.mxu0 0.0
          %1084 = vmatprep.subr.mxu0 0.0
          %1085 = vmatpush1.msra.mxu0 0.0
          %1086 = vmatprep.subr.mxu0 0.0
          %1087 = vmatpush1.msra.mxu0 0.0
          %1088 = vmatprep.subr.mxu0 0.0
          %1089 = vmatpush1.msra.mxu0 0.0
          %1090 = vmatprep.subr.mxu0 0.0
          %1091 = vmatpush1.msra.mxu0 0.0
          %1092 = vmatprep.subr.mxu0 0.0
          %1093 = vmatpush1.msra.mxu0 0.0
          %1094 = vmatprep.subr.mxu0 0.0
          %1095 = vmatpush1.msra.mxu0 0.0
          %1096 = vmatprep.subr.mxu0 0.0
          %1097 = vmatpush1.msra.mxu0 0.0
          %1098 = vmatprep.subr.mxu0 0.0
          %1099 = vmatpush1.msra.mxu0 0.0
          %1100 = vmatprep.subr.mxu0 0.0
          %1101 = vmatpush1.msra.mxu0 0.0
          %1102 = vmatprep.subr.mxu0 0.0
          %1103 = vmatpush1.msra.mxu0 0.0
          %1104 = vmatprep.subr.mxu0 0.0
          %1105 = vmatpush1.msra.mxu0 0.0
          %1106 = vmatprep.subr.mxu0 0.0
          %1107 = vmatpush1.msra.mxu0 0.0
          %1108 = vmatprep.subr.mxu0 0.0
          %1109 = vmatpush1.msra.mxu0 0.0
          %1110 = vmatprep.subr.mxu0 0.0
          %1111 = vmatpush1.msra.mxu0 0.0
          %1112 = vmatprep.subr.mxu0 0.0
          %1113 = vmatpush1.msra.mxu0 0.0
          %1114 = vmatprep.mubr.f32.mxu0 0.0
          %1115 = vmatmul.mubr.f32.gmra.mrb[0].mxu0 %v1027
          %v1116 = vpop.f32.mrb[0].mxu0
          %v1117 = vadd.f32 %v1024, %v1116
          %v1118 = vpop.f32.mrb[0].mxu0
          %1119 = vmatprep.mubr.f32.mxu0 0.0
          %1120 = vmatmul.mubr.f32.gmra.mrb[0].mxu0 %v1030
          %v1121 = vpop.f32.mrb[0].mxu0
          %v1122 = vadd.f32 %v1024, %v1121
          %v1123 = vpop.f32.mrb[0].mxu0
          %1124 = vmatprep.mubr.f32.mxu0 0.0
          %1125 = vmatmul.mubr.f32.gmra.mrb[0].mxu0 %v1033
          %v1126 = vpop.f32.mrb[0].mxu0
          %v1127 = vadd.f32 %v1024, %v1126
          %v1128 = vpop.f32.mrb[0].mxu0
          %1129 = vmatprep.mubr.f32.mxu0 0.0
          %1130 = vmatmul.mubr.f32.gmra.mrb[0].mxu0 %v1036
          %v1131 = vpop.f32.mrb[0].mxu0
          %v1132 = vadd.f32 %v1024, %v1131
          %v1133 = vpop.f32.mrb[0].mxu0
          %1134 = vmatprep.mubr.f32.mxu0 0.0
          %1135 = vmatmul.mubr.f32.gmra.mrb[0].mxu0 %v1039
          %v1136 = vpop.f32.mrb[0].mxu0
          %v1137 = vadd.f32 %v1024, %v1136
          %v1138 = vpop.f32.mrb[0].mxu0
          %1139 = vmatprep.mubr.f32.mxu0 0.0
          %1140 = vmatmul.mubr.f32.gmra.mrb[0].mxu0 %v1042
          %v1141 = vpop.f32.mrb[0].mxu0
          %v1142 = vadd.f32 %v1024, %v1141
          %v1143 = vpop.f32.mrb[0].mxu0
          %1144 = vmatprep.mubr.f32.mxu0 0.0
          %1145 = vmatmul.mubr.f32.gmra.mrb[0].mxu0 %v1045
          %v1146 = vpop.f32.mrb[0].mxu0
          %v1147 = vadd.f32 %v1024, %v1146
          %v1148 = vpop.f32.mrb[0].mxu0
          %1149 = vmatprep.mubr.f32.mxu0 0.0
          %1150 = vmatmul.mubr.f32.gmra.mrb[0].mxu0 %v1048
          %v1151 = vpop.f32.mrb[0].mxu0
          %v1152 = vadd.f32 %v1024, %v1151
          %v1153 = vpop.f32.mrb[0].mxu0
          %1154 = vdwg.mxu0
          %1155 = vst.msk [vmem:[%s9] sm:$0xff] %vm554, %v1117
          %1156 = vst.msk [vmem:[%s9 + $0x8] sm:$0xff] %vm554, %v1122
          %1157 = vst.msk [vmem:[%s9 + $0x10] sm:$0xff] %vm554, %v1127
          %1158 = vst.msk [vmem:[%s9 + $0x18] sm:$0xff] %vm554, %v1132
          %1159 = vst.msk [vmem:[%s9 + $0x20] sm:$0xff] %vm554, %v1137
          %1160 = vst.msk [vmem:[%s9 + $0x28] sm:$0xff] %vm554, %v1142
          %1161 = vst.msk [vmem:[%s9 + $0x30] sm:$0xff] %vm554, %v1147
          %1162 = vst.msk [vmem:[%s9 + $0x38] sm:$0xff] %vm554, %v1152
        $region76: #{tpu_custom_call.1} parent=55 // pred_fallthru
          _
        // Predicated region
        $region77: #{tpu_custom_call.1} parent=55 // pred_check
          %p1163 = pneg %p229
        $region78: #{tpu_custom_call.1} parent=55 // pred_check_branch
          %1165 = sbr.rel (%p1163) target = $region80
        $region79: #{tpu_custom_call.1} parent=55 // pred_region
          _
        $region80: #{tpu_custom_call.1} parent=55 // pred_fallthru
          _
        // Predicated region
        $region81: #{tpu_custom_call.1} parent=55 // pred_check
          %p1166 = pneg %p229
        $region82: #{tpu_custom_call.1} parent=55 // pred_check_branch
          %1168 = sbr.rel (%p1166) target = $region84
        $region83: #{tpu_custom_call.1} parent=55 // pred_region
          _
        $region84: #{tpu_custom_call.1} parent=55 // pred_fallthru
          _
      $region56: #{tpu_custom_call.1} parent=5 // pred_fallthru
        _
      %p1169 = scmp.le.s32.totalorder 2, %s17
      // Predicated region
      $region85: #{tpu_custom_call.1} parent=5 // pred_check
        %p1170 = pneg %p1169
      $region86: #{tpu_custom_call.1} parent=5 // pred_check_branch
        %1172 = sbr.rel (%p1170) target = $region88
      $region87: #{tpu_custom_call.1} parent=5 // pred_region
        %s1173 = ssub.s32 %s17, 2
      $region88: #{tpu_custom_call.1} parent=5 // pred_fallthru
        _
    $region6: #{tpu_custom_call.1} parent=1 // loop_footer
      %s21 = sadd.s32 1, %s17
    $region7: #{tpu_custom_call.1} parent=1 // loop_footer_branch
      %16 = sbr.rel target = $region3
    $region8: #{tpu_custom_call.1} parent=1 // loop_exit
      _
    %1174 = vsyncpa [#allocation5], 1
    %s1175 = scalar_lea.sflag [#allocation5], 1
    %1176 = vsyncpa %s1175, 1
    %1177 = vsyncpa [#allocation7], 1

</llo_original>
